<compile_context>
chip_gen: v7x
topology: tpu7x:2x2x1
jax: 0.10.0
libtpu: 0.0.40
codegen_flags: <defaults>
</compile_context>

<pallas_src>
import jax
import jax.numpy as jnp
from jax.experimental import pallas as pl
from jax.experimental.pallas import tpu as pltpu

LEAKY_SLOPE = 0.01  # torch.nn.LeakyReLU default


def _leaky(v):
    return jnp.where(v > 0, v, LEAKY_SLOPE * v)


def _mm(a, b):
    return jnp.dot(a, b, preferred_element_type=jnp.float32)


def _round_up(x, m):
    return ((x + m - 1) // m) * m


def icm_kernel(
    in_ref,                   # (tm, IN_W) bf16 : [x | nx | act | 0pad]
    w1_ref, w2_ref, w3_ref,   # fused (block-diagonal) feature-net weights
    wme_ref, wmx_ref,         # fused hidden layer (inverse L1 + forward_net_1)
    woh_ref, wox_ref,         # fused output layer (inverse L2 + forward_net_2)
    bias_ref,                 # (8, BW) f32 bias slab
    out_ref,                  # (tm, OUT_W)     : [enc_n | pred_next | pred_act | junk]
):
    H = w2_ref.shape[0] // 2
    NA = woh_ref.shape[1] - H
    cd = in_ref.dtype

    xs = in_ref[...]                       # bf16, consumed whole (never sliced)
    bias = bias_ref[...]                   # f32 (8, BW)
    b1 = bias[0:1, :2 * H]
    b2 = bias[1:2, :2 * H]
    b3 = bias[2:3, :2 * H]
    bm = bias[3:4, :2 * H]
    bo = bias[4:5, :H + NA]

    # Feature net on x and nx simultaneously -> [enc | enc_n]  (f32 elementwise)
    h = _leaky(_mm(xs, w1_ref[...]) + b1)                       # (tm, 2H) f32
    h = _leaky(_mm(h.astype(cd), w2_ref[...]) + b2)
    enc_both = _mm(h.astype(cd), w3_ref[...]) + b3              # (tm, 2H) f32
    eb = enc_both.astype(cd)

    # inverse_net L1 + forward_net_1 fused -> [h_inv | f1]
    hm = _leaky(_mm(eb, wme_ref[...]) + _mm(xs, wmx_ref[...]) + bm)

    # inverse_net L2 + forward_net_2 fused -> [pred_next | pred_action]
    pred = _mm(hm.astype(cd), woh_ref[...]) + _mm(xs, wox_ref[...]) + bo

    od = out_ref.dtype
    out_ref[:, :H] = enc_both[:, H:].astype(od)        # real_next_inputs_feature
    out_ref[:, H:2 * H + NA] = pred.astype(od)         # [pred_next | pred_action]


def _pack_weights(params, D, H, NA, IN_W, cd):
    """Host-side packing of the 8 Linear layers into 7 fused block matrices
    (bf16) plus one f32 bias slab.  Weights are stored (in_dim, out_dim)."""
    f32 = jnp.float32
    w1, w2, w3 = params["w1"], params["w2"], params["w3"]
    inv_w1, inv_w2 = params["inv_w1"], params["inv_w2"]
    f1_w, f2_w = params["f1_w"], params["f2_w"]

    # Feature net, block-diagonal: input slab lanes [x | nx | act | pad].
    W1 = (jnp.zeros((IN_W, 2 * H), f32)
          .at[:D, :H].set(w1)
          .at[D:2 * D, H:].set(w1))
    W2 = jnp.zeros((2 * H, 2 * H), f32).at[:H, :H].set(w2).at[H:, H:].set(w2)
    W3 = jnp.zeros((2 * H, 2 * H), f32).at[:H, :H].set(w3).at[H:, H:].set(w3)

    # Hidden fusion: [enc | enc_n] -> [h_inv | f1]; action contribution via slab.
    Wmid_e = (jnp.zeros((2 * H, 2 * H), f32)
              .at[:H, :H].set(inv_w1[:H])        # enc   -> inverse hidden
              .at[H:, :H].set(inv_w1[H:])        # enc_n -> inverse hidden
              .at[:H, H:].set(f1_w[:H]))         # enc   -> forward_net_1 hidden
    Wmid_x = jnp.zeros((IN_W, 2 * H), f32).at[2 * D:2 * D + NA, H:].set(f1_w[H:])

    # Output fusion: [h_inv | f1] -> [pred_next | pred_action].
    Wout_h = (jnp.zeros((2 * H, H + NA), f32)
              .at[:H, H:].set(inv_w2)            # h_inv -> pred_action
              .at[H:, :H].set(f2_w[:H]))         # f1    -> pred_next
    Wout_x = jnp.zeros((IN_W, H + NA), f32).at[2 * D:2 * D + NA, :H].set(f2_w[H:])

    weights = tuple(w.astype(cd) for w in (W1, W2, W3, Wmid_e, Wmid_x, Wout_h, Wout_x))

    BW = _round_up(max(2 * H, H + NA), 128)
    b1, b2, b3 = params["b1"][0], params["b2"][0], params["b3"][0]
    bias = (jnp.zeros((8, BW), f32)
            .at[0, :H].set(b1).at[0, H:2 * H].set(b1)
            .at[1, :H].set(b2).at[1, H:2 * H].set(b2)
            .at[2, :H].set(b3).at[2, H:2 * H].set(b3)
            .at[3, :H].set(params["inv_b1"][0]).at[3, H:2 * H].set(params["f1_b"][0])
            .at[4, :H].set(params["f2_b"][0]).at[4, H:H + NA].set(params["inv_b2"][0]))
    return weights, bias


def icm_forward(inputs, next_inputs, actions, params, *,
                tile_m=1024, compute_dtype=jnp.bfloat16, out_dtype=jnp.bfloat16):
    """ICM forward pass. inputs/next_inputs: (B, A, D); actions: (B, A, NA)."""
    B, A, D = inputs.shape
    NA = actions.shape[-1]
    H = params["w1"].shape[1]
    M = B * A
    cd = compute_dtype

    IN_W = _round_up(2 * D + NA, 128)     # lane-dense input slab width
    OUT_W = _round_up(2 * H + NA, 128)    # lane-dense output slab width

    # Row tile: multiple of 16 (bf16 sublane packing), sized so the grid step
    # count equals cdiv(M, tile_m) and padding waste stays below one tile.
    n_steps = max(1, -(-M // int(tile_m)))
    tile_m = _round_up(-(-M // n_steps), 16)
    M_pad = tile_m * n_steps

    # One fused reshape + concat + cast + pad into the packed input slab.
    slab = jnp.concatenate(
        [inputs.reshape(M, D), next_inputs.reshape(M, D), actions.reshape(M, NA)],
        axis=-1).astype(cd)
    slab = jnp.pad(slab, ((0, M_pad - M), (0, IN_W - (2 * D + NA))))

    weights, bias = _pack_weights(params, D, H, NA, IN_W, cd)

    def row_spec(width):
        return pl.BlockSpec((tile_m, width), lambda i: (i, 0))

    def rep_spec(shape):
        return pl.BlockSpec(shape, lambda i: (0, 0))

    in_specs = ([row_spec(IN_W)]
                + [rep_spec(tuple(w.shape)) for w in weights]
                + [rep_spec(tuple(bias.shape))])

    # --- cost estimate (helps XLA schedule around the call) ---
    flops_per_row = 2 * (IN_W * 2 * H                          # feature L1
                         + 2 * H * 2 * H                       # feature L2
                         + 2 * H * 2 * H                       # feature L3
                         + 2 * H * 2 * H + IN_W * 2 * H        # fused hidden
                         + 2 * H * (H + NA) + IN_W * (H + NA))  # fused output
    cd_bytes = jnp.dtype(cd).itemsize
    od_bytes = jnp.dtype(out_dtype).itemsize
    bytes_w = sum(int(w.size) for w in weights) * cd_bytes + int(bias.size) * 4
    bytes_in = M_pad * IN_W * cd_bytes
    bytes_out = M_pad * OUT_W * od_bytes
    cost = pl.CostEstimate(flops=int(M_pad * flops_per_row), transcendentals=0,
                           bytes_accessed=int(bytes_in + bytes_w + bytes_out))

    # --- VMEM budget: double-buffered I/O tiles + weights + f32 intermediates,
    #     capped at 75% of the chip's physical VMEM (portable v5e/v6e/v7x). ---
    tile_io = tile_m * (IN_W * cd_bytes + OUT_W * od_bytes)
    interm = tile_m * 2 * H * 4 * 4
    vmem_needed = 2 * tile_io + 2 * bytes_w + interm
    try:
        vmem_cap = int(pltpu.get_tpu_info().vmem_capacity_bytes)
    except Exception:
        vmem_cap = 64 * 1024 * 1024
    vmem_limit_bytes = int(min(max(2 * vmem_needed, 16 * 1024 * 1024),
                               (vmem_cap * 3) // 4))

    out = pl.pallas_call(
        icm_kernel,
        out_shape=jax.ShapeDtypeStruct((M_pad, OUT_W), out_dtype),
        grid_spec=pltpu.PrefetchScalarGridSpec(
            num_scalar_prefetch=0,
            grid=(M_pad // tile_m,),
            in_specs=in_specs,
            out_specs=pl.BlockSpec((tile_m, OUT_W), lambda i: (i, 0)),
        ),
        compiler_params=pltpu.CompilerParams(
            dimension_semantics=("parallel",),
            vmem_limit_bytes=vmem_limit_bytes),
        cost_estimate=cost,
    )(slab, *weights, bias)

    real = out[:M, :H].reshape(B, A, H)                     # real_next_inputs_feature
    pred_next = out[:M, H:2 * H].reshape(B, A, H)           # pred_next_inputs_feature
    pred_act = out[:M, 2 * H:2 * H + NA].reshape(B, A, NA)  # pred_action
    return real, pred_next, pred_act


def init_params(key, input_dim, hidden_dim, n_actions):
    """Deterministic synthetic parameters, weights stored (in, out)."""
    ks = jax.random.split(key, 8)

    def lin(k, din, dout):
        w = (jax.random.normal(k, (din, dout), jnp.float32) / jnp.sqrt(din)).astype(jnp.float32)
        b = jnp.zeros((1, dout), jnp.float32)
        return w, b

    w1, b1 = lin(ks[0], input_dim, hidden_dim)
    w2, b2 = lin(ks[1], hidden_dim, hidden_dim)
    w3, b3 = lin(ks[2], hidden_dim, hidden_dim)
    inv_w1, inv_b1 = lin(ks[3], 2 * hidden_dim, hidden_dim)
    inv_w2, inv_b2 = lin(ks[4], hidden_dim, n_actions)
    f1_w, f1_b = lin(ks[5], hidden_dim + n_actions, hidden_dim)
    f2_w, f2_b = lin(ks[6], hidden_dim + n_actions, hidden_dim)
    return dict(
        w1=w1, b1=b1, w2=w2, b2=b2, w3=w3, b3=b3,
        inv_w1=inv_w1, inv_b1=inv_b1, inv_w2=inv_w2, inv_b2=inv_b2,
        f1_w=f1_w, f1_b=f1_b, f2_w=f2_w, f2_b=f2_b,
    )


def icm_reference(inputs, next_inputs, actions, params, compute_dtype=jnp.bfloat16):
    """Pure-JAX reference mirroring the PyTorch forward semantics, with the
    same bf16-matmul / f32-elementwise precision as the kernel."""
    cd = compute_dtype

    def mm(a, w):
        return jnp.dot(a.astype(cd), w.astype(cd), preferred_element_type=jnp.float32)

    def feature(z):
        h = _leaky(mm(z, params["w1"]) + params["b1"])
        h = _leaky(mm(h, params["w2"]) + params["b2"])
        return mm(h, params["w3"]) + params["b3"]

    enc = feature(inputs)
    enc_n = feature(next_inputs)
    pa = _leaky(mm(jnp.concatenate([enc, enc_n], -1), params["inv_w1"]) + params["inv_b1"])
    pa = mm(pa, params["inv_w2"]) + params["inv_b2"]
    f1 = _leaky(mm(jnp.concatenate([enc, actions], -1), params["f1_w"]) + params["f1_b"])
    pn = mm(jnp.concatenate([f1, actions], -1), params["f2_w"]) + params["f2_b"]
    return enc_n, pn, pa


if __name__ == "__main__":
    # args-equivalent hyperparameters
    B = 2              # batch
    N_AGENTS = 4
    INPUT_SHAPE = 32   # int -> non-CNN branch
    FEATURE_HIDDEN_DIM = 32
    N_ACTIONS = 8

    key = jax.random.PRNGKey(0)
    k_in, k_next, k_act, k_param = jax.random.split(key, 4)

    inputs = jax.random.normal(k_in, (B, N_AGENTS, INPUT_SHAPE), jnp.float32)
    next_inputs = jax.random.normal(k_next, (B, N_AGENTS, INPUT_SHAPE), jnp.float32)
    act_idx = jax.random.randint(k_act, (B, N_AGENTS), 0, N_ACTIONS)
    actions = jax.nn.one_hot(act_idx, N_ACTIONS, dtype=jnp.float32)

    params = init_params(k_param, INPUT_SHAPE, FEATURE_HIDDEN_DIM, N_ACTIONS)

    fwd = jax.jit(lambda a, b, c: icm_forward(a, b, c, params))
    real, pred_next, pred_act = fwd(inputs, next_inputs, actions)
    jax.block_until_ready((real, pred_next, pred_act))

    r_ref, pn_ref, pa_ref = icm_reference(inputs, next_inputs, actions, params)
    # Kernel emits bf16 output (writeback-bound): tolerance covers the final
    # bf16 rounding on top of the shared bf16-matmul precision.
    assert jnp.allclose(real.astype(jnp.float32), r_ref, atol=2e-2, rtol=2e-2)
    assert jnp.allclose(pred_next.astype(jnp.float32), pn_ref, atol=2e-2, rtol=2e-2)
    assert jnp.allclose(pred_act.astype(jnp.float32), pa_ref, atol=2e-2, rtol=2e-2)

    print("KERNEL_OK")
</pallas_src>

<mosaic_0001>
module attributes {stable_mosaic.version = 11 : i64} {
  func.func @icm_kernel(%arg0: i32, %arg1: memref<16x128xbf16, #tpu.memory_space<vmem>>, %arg2: memref<128x64xbf16, #tpu.memory_space<vmem>>, %arg3: memref<64x64xbf16, #tpu.memory_space<vmem>>, %arg4: memref<64x64xbf16, #tpu.memory_space<vmem>>, %arg5: memref<64x64xbf16, #tpu.memory_space<vmem>>, %arg6: memref<128x64xbf16, #tpu.memory_space<vmem>>, %arg7: memref<64x40xbf16, #tpu.memory_space<vmem>>, %arg8: memref<128x40xbf16, #tpu.memory_space<vmem>>, %arg9: memref<8x128xf32, #tpu.memory_space<vmem>>, %arg10: memref<16x128xbf16, #tpu.memory_space<vmem>>) attributes {dimension_semantics = [#tpu.dimension_semantics<parallel>], iteration_bounds = array<i64: 1>, scalar_prefetch = 0 : i64, scratch_operands = 0 : i64, tpu.core_type = #tpu.core_type<tc>, window_params = [{transform_indices = @transform_0, window_bounds = array<i64: 16, 128>}, {pipeline_mode = #tpu.pipeline_mode<synchronous>, transform_indices = @transform_1, window_bounds = array<i64: 128, 64>}, {pipeline_mode = #tpu.pipeline_mode<synchronous>, transform_indices = @transform_2, window_bounds = array<i64: 64, 64>}, {pipeline_mode = #tpu.pipeline_mode<synchronous>, transform_indices = @transform_3, window_bounds = array<i64: 64, 64>}, {pipeline_mode = #tpu.pipeline_mode<synchronous>, transform_indices = @transform_4, window_bounds = array<i64: 64, 64>}, {pipeline_mode = #tpu.pipeline_mode<synchronous>, transform_indices = @transform_5, window_bounds = array<i64: 128, 64>}, {pipeline_mode = #tpu.pipeline_mode<synchronous>, transform_indices = @transform_6, window_bounds = array<i64: 64, 40>}, {pipeline_mode = #tpu.pipeline_mode<synchronous>, transform_indices = @transform_7, window_bounds = array<i64: 128, 40>}, {pipeline_mode = #tpu.pipeline_mode<synchronous>, transform_indices = @transform_8, window_bounds = array<i64: 8, 128>}, {transform_indices = @transform_9, window_bounds = array<i64: 16, 128>}]} {
    %c0 = arith.constant 0 : index
    %c0_0 = arith.constant 0 : index
    %0 = vector.load %arg1[%c0, %c0_0] : memref<16x128xbf16, #tpu.memory_space<vmem>>, vector<16x128xbf16>
    %c0_1 = arith.constant 0 : index
    %c0_2 = arith.constant 0 : index
    %1 = vector.load %arg9[%c0_1, %c0_2] : memref<8x128xf32, #tpu.memory_space<vmem>>, vector<8x128xf32>
    %2 = vector.extract_strided_slice %1 {offsets = [0, 0], sizes = [1, 64], strides = [1, 1]} : vector<8x128xf32> to vector<1x64xf32>
    %3 = vector.extract_strided_slice %1 {offsets = [1, 0], sizes = [1, 64], strides = [1, 1]} : vector<8x128xf32> to vector<1x64xf32>
    %4 = vector.extract_strided_slice %1 {offsets = [2, 0], sizes = [1, 64], strides = [1, 1]} : vector<8x128xf32> to vector<1x64xf32>
    %5 = vector.extract_strided_slice %1 {offsets = [3, 0], sizes = [1, 64], strides = [1, 1]} : vector<8x128xf32> to vector<1x64xf32>
    %6 = vector.extract_strided_slice %1 {offsets = [4, 0], sizes = [1, 40], strides = [1, 1]} : vector<8x128xf32> to vector<1x40xf32>
    %c0_3 = arith.constant 0 : index
    %c0_4 = arith.constant 0 : index
    %7 = vector.load %arg2[%c0_3, %c0_4] : memref<128x64xbf16, #tpu.memory_space<vmem>>, vector<128x64xbf16>
    %cst = arith.constant dense<0.000000e+00> : vector<16x64xf32>
    %8 = tpu.matmul %0, %7, %cst {dimension_numbers = #tpu.dot_dimension_numbers<[1], [0], [0], [1], [0, 0, 1, 1], [], []>} : vector<16x128xbf16>, vector<128x64xbf16>, vector<16x64xf32> -> vector<16x64xf32>
    %9 = vector.broadcast %2 : vector<1x64xf32> to vector<16x64xf32>
    %10 = arith.addf %8, %9 : vector<16x64xf32>
    %cst_5 = arith.constant 0.000000e+00 : f32
    %11 = vector.broadcast %cst_5 : f32 to vector<16x64xf32>
    %12 = arith.cmpf ogt, %10, %11 : vector<16x64xf32>
    %cst_6 = arith.constant 0.00999999977 : f32
    %13 = vector.broadcast %cst_6 : f32 to vector<16x64xf32>
    %14 = arith.mulf %13, %10 : vector<16x64xf32>
    %15 = arith.select %12, %10, %14 : vector<16x64xi1>, vector<16x64xf32>
    %16 = arith.truncf %15 : vector<16x64xf32> to vector<16x64xbf16>
    %c0_7 = arith.constant 0 : index
    %c0_8 = arith.constant 0 : index
    %17 = vector.load %arg3[%c0_7, %c0_8] : memref<64x64xbf16, #tpu.memory_space<vmem>>, vector<64x64xbf16>
    %cst_9 = arith.constant dense<0.000000e+00> : vector<16x64xf32>
    %18 = tpu.matmul %16, %17, %cst_9 {dimension_numbers = #tpu.dot_dimension_numbers<[1], [0], [0], [1], [0, 0, 1, 1], [], []>} : vector<16x64xbf16>, vector<64x64xbf16>, vector<16x64xf32> -> vector<16x64xf32>
    %19 = vector.broadcast %3 : vector<1x64xf32> to vector<16x64xf32>
    %20 = arith.addf %18, %19 : vector<16x64xf32>
    %cst_10 = arith.constant 0.000000e+00 : f32
    %21 = vector.broadcast %cst_10 : f32 to vector<16x64xf32>
    %22 = arith.cmpf ogt, %20, %21 : vector<16x64xf32>
    %cst_11 = arith.constant 0.00999999977 : f32
    %23 = vector.broadcast %cst_11 : f32 to vector<16x64xf32>
    %24 = arith.mulf %23, %20 : vector<16x64xf32>
    %25 = arith.select %22, %20, %24 : vector<16x64xi1>, vector<16x64xf32>
    %26 = arith.truncf %25 : vector<16x64xf32> to vector<16x64xbf16>
    %c0_12 = arith.constant 0 : index
    %c0_13 = arith.constant 0 : index
    %27 = vector.load %arg4[%c0_12, %c0_13] : memref<64x64xbf16, #tpu.memory_space<vmem>>, vector<64x64xbf16>
    %cst_14 = arith.constant dense<0.000000e+00> : vector<16x64xf32>
    %28 = tpu.matmul %26, %27, %cst_14 {dimension_numbers = #tpu.dot_dimension_numbers<[1], [0], [0], [1], [0, 0, 1, 1], [], []>} : vector<16x64xbf16>, vector<64x64xbf16>, vector<16x64xf32> -> vector<16x64xf32>
    %29 = vector.broadcast %4 : vector<1x64xf32> to vector<16x64xf32>
    %30 = arith.addf %28, %29 : vector<16x64xf32>
    %31 = arith.truncf %30 : vector<16x64xf32> to vector<16x64xbf16>
    %c0_15 = arith.constant 0 : index
    %c0_16 = arith.constant 0 : index
    %32 = vector.load %arg5[%c0_15, %c0_16] : memref<64x64xbf16, #tpu.memory_space<vmem>>, vector<64x64xbf16>
    %cst_17 = arith.constant dense<0.000000e+00> : vector<16x64xf32>
    %33 = tpu.matmul %31, %32, %cst_17 {dimension_numbers = #tpu.dot_dimension_numbers<[1], [0], [0], [1], [0, 0, 1, 1], [], []>} : vector<16x64xbf16>, vector<64x64xbf16>, vector<16x64xf32> -> vector<16x64xf32>
    %c0_18 = arith.constant 0 : index
    %c0_19 = arith.constant 0 : index
    %34 = vector.load %arg6[%c0_18, %c0_19] : memref<128x64xbf16, #tpu.memory_space<vmem>>, vector<128x64xbf16>
    %cst_20 = arith.constant dense<0.000000e+00> : vector<16x64xf32>
    %35 = tpu.matmul %0, %34, %cst_20 {dimension_numbers = #tpu.dot_dimension_numbers<[1], [0], [0], [1], [0, 0, 1, 1], [], []>} : vector<16x128xbf16>, vector<128x64xbf16>, vector<16x64xf32> -> vector<16x64xf32>
    %36 = arith.addf %33, %35 : vector<16x64xf32>
    %37 = vector.broadcast %5 : vector<1x64xf32> to vector<16x64xf32>
    %38 = arith.addf %36, %37 : vector<16x64xf32>
    %cst_21 = arith.constant 0.000000e+00 : f32
    %39 = vector.broadcast %cst_21 : f32 to vector<16x64xf32>
    %40 = arith.cmpf ogt, %38, %39 : vector<16x64xf32>
    %cst_22 = arith.constant 0.00999999977 : f32
    %41 = vector.broadcast %cst_22 : f32 to vector<16x64xf32>
    %42 = arith.mulf %41, %38 : vector<16x64xf32>
    %43 = arith.select %40, %38, %42 : vector<16x64xi1>, vector<16x64xf32>
    %44 = arith.truncf %43 : vector<16x64xf32> to vector<16x64xbf16>
    %c0_23 = arith.constant 0 : index
    %c0_24 = arith.constant 0 : index
    %45 = vector.load %arg7[%c0_23, %c0_24] : memref<64x40xbf16, #tpu.memory_space<vmem>>, vector<64x40xbf16>
    %cst_25 = arith.constant dense<0.000000e+00> : vector<16x40xf32>
    %46 = tpu.matmul %44, %45, %cst_25 {dimension_numbers = #tpu.dot_dimension_numbers<[1], [0], [0], [1], [0, 0, 1, 1], [], []>} : vector<16x64xbf16>, vector<64x40xbf16>, vector<16x40xf32> -> vector<16x40xf32>
    %c0_26 = arith.constant 0 : index
    %c0_27 = arith.constant 0 : index
    %47 = vector.load %arg8[%c0_26, %c0_27] : memref<128x40xbf16, #tpu.memory_space<vmem>>, vector<128x40xbf16>
    %cst_28 = arith.constant dense<0.000000e+00> : vector<16x40xf32>
    %48 = tpu.matmul %0, %47, %cst_28 {dimension_numbers = #tpu.dot_dimension_numbers<[1], [0], [0], [1], [0, 0, 1, 1], [], []>} : vector<16x128xbf16>, vector<128x40xbf16>, vector<16x40xf32> -> vector<16x40xf32>
    %49 = arith.addf %46, %48 : vector<16x40xf32>
    %50 = vector.broadcast %6 : vector<1x40xf32> to vector<16x40xf32>
    %51 = arith.addf %49, %50 : vector<16x40xf32>
    %52 = vector.extract_strided_slice %30 {offsets = [0, 32], sizes = [16, 32], strides = [1, 1]} : vector<16x64xf32> to vector<16x32xf32>
    %53 = arith.truncf %52 : vector<16x32xf32> to vector<16x32xbf16>
    %c0_29 = arith.constant 0 : index
    %c0_30 = arith.constant 0 : index
    %54 = vector.load %arg10[%c0_29, %c0_30] : memref<16x128xbf16, #tpu.memory_space<vmem>>, vector<16x32xbf16>
    tpu.vector_store %arg10[%c0_29, %c0_30], %53 {strides = array<i32>} : memref<16x128xbf16, #tpu.memory_space<vmem>>, vector<16x32xbf16>,
    %55 = arith.truncf %51 : vector<16x40xf32> to vector<16x40xbf16>
    %c0_31 = arith.constant 0 : index
    %c32 = arith.constant 32 : index
    %56 = vector.load %arg10[%c0_31, %c32] : memref<16x128xbf16, #tpu.memory_space<vmem>>, vector<16x40xbf16>
    tpu.vector_store %arg10[%c0_31, %c32], %55 {strides = array<i32>} : memref<16x128xbf16, #tpu.memory_space<vmem>>, vector<16x40xbf16>,
    return
  }
  func.func @transform_0(%arg0: i32) -> (i32, i32) {
    %c0_i32 = arith.constant 0 : i32
    %c0_i32_0 = arith.constant 0 : i32
    return %arg0, %c0_i32 : i32, i32
  }
  func.func @transform_1(%arg0: i32) -> (i32, i32) {
    %c0_i32 = arith.constant 0 : i32
    %c0_i32_0 = arith.constant 0 : i32
    %c0_i32_1 = arith.constant 0 : i32
    return %c0_i32, %c0_i32_0 : i32, i32
  }
  func.func @transform_2(%arg0: i32) -> (i32, i32) {
    %c0_i32 = arith.constant 0 : i32
    %c0_i32_0 = arith.constant 0 : i32
    %c0_i32_1 = arith.constant 0 : i32
    return %c0_i32, %c0_i32_0 : i32, i32
  }
  func.func @transform_3(%arg0: i32) -> (i32, i32) {
    %c0_i32 = arith.constant 0 : i32
    %c0_i32_0 = arith.constant 0 : i32
    %c0_i32_1 = arith.constant 0 : i32
    return %c0_i32, %c0_i32_0 : i32, i32
  }
  func.func @transform_4(%arg0: i32) -> (i32, i32) {
    %c0_i32 = arith.constant 0 : i32
    %c0_i32_0 = arith.constant 0 : i32
    %c0_i32_1 = arith.constant 0 : i32
    return %c0_i32, %c0_i32_0 : i32, i32
  }
  func.func @transform_5(%arg0: i32) -> (i32, i32) {
    %c0_i32 = arith.constant 0 : i32
    %c0_i32_0 = arith.constant 0 : i32
    %c0_i32_1 = arith.constant 0 : i32
    return %c0_i32, %c0_i32_0 : i32, i32
  }
  func.func @transform_6(%arg0: i32) -> (i32, i32) {
    %c0_i32 = arith.constant 0 : i32
    %c0_i32_0 = arith.constant 0 : i32
    %c0_i32_1 = arith.constant 0 : i32
    return %c0_i32, %c0_i32_0 : i32, i32
  }
  func.func @transform_7(%arg0: i32) -> (i32, i32) {
    %c0_i32 = arith.constant 0 : i32
    %c0_i32_0 = arith.constant 0 : i32
    %c0_i32_1 = arith.constant 0 : i32
    return %c0_i32, %c0_i32_0 : i32, i32
  }
  func.func @transform_8(%arg0: i32) -> (i32, i32) {
    %c0_i32 = arith.constant 0 : i32
    %c0_i32_0 = arith.constant 0 : i32
    %c0_i32_1 = arith.constant 0 : i32
    return %c0_i32, %c0_i32_0 : i32, i32
  }
  func.func @transform_9(%arg0: i32) -> (i32, i32) {
    %c0_i32 = arith.constant 0 : i32
    %c0_i32_0 = arith.constant 0 : i32
    return %arg0, %c0_i32 : i32, i32
  }
}

</mosaic_0001>

<llo_original>
// kernel: _lambda_.1
$region0: #{_lambda_.1}
  #allocation0 [shape = 'u32[]', space=smem, size = 0x4, offset = 0x4, fixed_abs, tag = 'smem constant byte address 0x4 - core index']
  #allocation1 [shape = 'u32[144,128]{1,0:T(1,128)}', space=vmem, size = 0x12000, scoped, tag = 'internal scratch']
  %s0 = inlined_call_operand.vmem [shape: bf16[16,128], index: 0, kind: input, shape index: {}]
  %s1 = inlined_call_operand.vmem [shape: bf16[128,64], index: 1, kind: input, shape index: {}]
  %s2 = inlined_call_operand.vmem [shape: bf16[64,64], index: 2, kind: input, shape index: {}]
  %s3 = inlined_call_operand.vmem [shape: bf16[64,64], index: 3, kind: input, shape index: {}]
  %s4 = inlined_call_operand.vmem [shape: bf16[64,64], index: 4, kind: input, shape index: {}]
  %s5 = inlined_call_operand.vmem [shape: bf16[128,64], index: 5, kind: input, shape index: {}]
  %s6 = inlined_call_operand.vmem [shape: bf16[64,40], index: 6, kind: input, shape index: {}]
  %s7 = inlined_call_operand.vmem [shape: bf16[128,40], index: 7, kind: input, shape index: {}]
  %s8 = inlined_call_operand.vmem [shape: f32[8,128], index: 8, kind: input, shape index: {}]
  %s9 = inlined_call_operand.vmem [shape: bf16[16,128], index: 9, kind: output, shape index: {}]
  %s10 = sld [smem:[#allocation0]]
  $region46: #{_lambda_.1} parent=0
    _
  %s12 = ssub.s32 1, %s10
  %s13 = scalar_select 0, %s12, %s10
  // Predicated region
  $region2: #{_lambda_.1} parent=0 // pred_check
    _
  $region3: #{_lambda_.1} parent=0 // pred_check_branch
    %15 = sbr.rel (0) target = $region5
  $region4: #{_lambda_.1} parent=0 // pred_region
    _
  $region5: #{_lambda_.1} parent=0 // pred_fallthru
    _
  // Predicated region
  $region6: #{_lambda_.1} parent=0 // pred_check
    _
  $region7: #{_lambda_.1} parent=0 // pred_check_branch
    %17 = sbr.rel (0) target = $region9
  $region8: #{_lambda_.1} parent=0 // pred_region
    _
  $region9: #{_lambda_.1} parent=0 // pred_fallthru
    _
  // Predicated region
  $region10: #{_lambda_.1} parent=0 // pred_check
    _
  $region11: #{_lambda_.1} parent=0 // pred_check_branch
    %19 = sbr.rel (0) target = $region13
  $region12: #{_lambda_.1} parent=0 // pred_region
    _
  $region13: #{_lambda_.1} parent=0 // pred_fallthru
    _
  // Predicated region
  $region14: #{_lambda_.1} parent=0 // pred_check
    _
  $region15: #{_lambda_.1} parent=0 // pred_check_branch
    %21 = sbr.rel (0) target = $region17
  $region16: #{_lambda_.1} parent=0 // pred_region
    _
  $region17: #{_lambda_.1} parent=0 // pred_fallthru
    _
  // Predicated region
  $region18: #{_lambda_.1} parent=0 // pred_check
    _
  $region19: #{_lambda_.1} parent=0 // pred_check_branch
    %23 = sbr.rel (0) target = $region21
  $region20: #{_lambda_.1} parent=0 // pred_region
    _
  $region21: #{_lambda_.1} parent=0 // pred_fallthru
    _
  // Predicated region
  $region22: #{_lambda_.1} parent=0 // pred_check
    _
  $region23: #{_lambda_.1} parent=0 // pred_check_branch
    %25 = sbr.rel (0) target = $region25
  $region24: #{_lambda_.1} parent=0 // pred_region
    _
  $region25: #{_lambda_.1} parent=0 // pred_fallthru
    _
  // Predicated region
  $region26: #{_lambda_.1} parent=0 // pred_check
    _
  $region27: #{_lambda_.1} parent=0 // pred_check_branch
    %27 = sbr.rel (0) target = $region29
  $region28: #{_lambda_.1} parent=0 // pred_region
    _
  $region29: #{_lambda_.1} parent=0 // pred_fallthru
    _
  // Predicated region
  $region30: #{_lambda_.1} parent=0 // pred_check
    _
  $region31: #{_lambda_.1} parent=0 // pred_check_branch
    %29 = sbr.rel (0) target = $region33
  $region32: #{_lambda_.1} parent=0 // pred_region
    _
  $region33: #{_lambda_.1} parent=0 // pred_fallthru
    _
  // Predicated region
  $region34: #{_lambda_.1} parent=0 // pred_check
    _
  $region35: #{_lambda_.1} parent=0 // pred_check_branch
    %31 = sbr.rel (0) target = $region37
  $region36: #{_lambda_.1} parent=0 // pred_region
    _
  $region37: #{_lambda_.1} parent=0 // pred_fallthru
    _
  %v33 = vld [vmem:[%s0] sm:$0xf]
  %v34 = vld [vmem:[%s0 + $0x4] sm:$0xf]
  %v35 = vld [vmem:[%s8] sm:$0xff]
  %v36 = vld [vmem:[%s1] sm:$0xf]
  %v37 = vld [vmem:[%s1 + $0x4] sm:$0xf]
  %v38 = vld [vmem:[%s1 + $0x8] sm:$0xf]
  %v39 = vld [vmem:[%s1 + $0xc] sm:$0xf]
  %v40 = vld [vmem:[%s1 + $0x10] sm:$0xf]
  %v41 = vld [vmem:[%s1 + $0x14] sm:$0xf]
  %v42 = vld [vmem:[%s1 + $0x18] sm:$0xf]
  %v43 = vld [vmem:[%s1 + $0x1c] sm:$0xf]
  %v44 = vld [vmem:[%s1 + $0x20] sm:$0xf]
  %v45 = vld [vmem:[%s1 + $0x24] sm:$0xf]
  %v46 = vld [vmem:[%s1 + $0x28] sm:$0xf]
  %v47 = vld [vmem:[%s1 + $0x2c] sm:$0xf]
  %v48 = vld [vmem:[%s1 + $0x30] sm:$0xf]
  %v49 = vld [vmem:[%s1 + $0x34] sm:$0xf]
  %v50 = vld [vmem:[%s1 + $0x38] sm:$0xf]
  %v51 = vld [vmem:[%s1 + $0x3c] sm:$0xf]
  %v52 = vlaneseq
  %v53 = vshrl.u32 %v52, 7
  %v54 = vsub.s32 0, %v53
  %v55 = vrot.slane %v35, %v54
  %v58 = vunpack.c.l.b16 %v33
  %v59 = vunpack.c.l.b16 %v34
  %v60 = vpack.c.b16 %v59, %v58
  %v78 = vunpack.c.l.b16 %v36
  %v79 = vunpack.c.l.b16 %v37
  %v80 = vunpack.c.l.b16 %v38
  %v81 = vunpack.c.l.b16 %v39
  %v82 = vunpack.c.l.b16 %v40
  %v83 = vunpack.c.l.b16 %v41
  %v84 = vunpack.c.l.b16 %v42
  %v85 = vunpack.c.l.b16 %v43
  %v86 = vunpack.c.l.b16 %v44
  %v87 = vunpack.c.l.b16 %v45
  %v88 = vunpack.c.l.b16 %v46
  %v89 = vunpack.c.l.b16 %v47
  %v90 = vunpack.c.l.b16 %v48
  %v91 = vunpack.c.l.b16 %v49
  %v92 = vunpack.c.l.b16 %v50
  %v93 = vunpack.c.l.b16 %v51
  %v94 = vpack.c.b16 %v79, %v78
  %v95 = vpack.c.b16 %v81, %v80
  %v96 = vpack.c.b16 %v83, %v82
  %v97 = vpack.c.b16 %v85, %v84
  %v98 = vpack.c.b16 %v87, %v86
  %v99 = vpack.c.b16 %v89, %v88
  %v100 = vpack.c.b16 %v91, %v90
  %v101 = vpack.c.b16 %v93, %v92
  %110 = vmatprep.subr.bf16.mxu0 0
  %111 = vmatpush1.bf16.msra.mxu0 %v94
  %112 = vmatprep.subr.bf16.mxu0 0
  %113 = vmatpush1.bf16.msra.mxu0 %v95
  %114 = vmatprep.subr.bf16.mxu0 0
  %115 = vmatpush1.bf16.msra.mxu0 %v96
  %116 = vmatprep.subr.bf16.mxu0 0
  %117 = vmatpush1.bf16.msra.mxu0 %v97
  %118 = vmatprep.subr.bf16.mxu0 0
  %119 = vmatpush1.bf16.msra.mxu0 %v98
  %120 = vmatprep.subr.bf16.mxu0 0
  %121 = vmatpush1.bf16.msra.mxu0 %v99
  %122 = vmatprep.subr.bf16.mxu0 0
  %123 = vmatpush1.bf16.msra.mxu0 %v100
  %124 = vmatprep.subr.bf16.mxu0 0
  %125 = vmatpush1.bf16.msra.mxu0 %v101
  %126 = vmatprep.subr.bf16.mxu0 0
  %127 = vmatpush1.bf16.msra.mxu0 0
  %128 = vmatprep.subr.bf16.mxu0 0
  %129 = vmatpush1.bf16.msra.mxu0 0
  %130 = vmatprep.subr.bf16.mxu0 0
  %131 = vmatpush1.bf16.msra.mxu0 0
  %132 = vmatprep.subr.bf16.mxu0 0
  %133 = vmatpush1.bf16.msra.mxu0 0
  %134 = vmatprep.subr.bf16.mxu0 0
  %135 = vmatpush1.bf16.msra.mxu0 0
  %136 = vmatprep.subr.bf16.mxu0 0
  %137 = vmatpush1.bf16.msra.mxu0 0
  %138 = vmatprep.subr.bf16.mxu0 0
  %139 = vmatpush1.bf16.msra.mxu0 0
  %140 = vmatprep.subr.bf16.mxu0 0
  %141 = vmatpush1.bf16.msra.mxu0 0
  %142 = vmatprep.mubr.bf16.mxu0 0
  %143 = vmatmul.mubr.bf16.gmra.mrb[0].mxu0 %v60
  %v144 = vpop.f32.mrb[0].mxu0
  %v145 = vadd.f32 %v55, %v144
  %v146 = vpop.f32.mrb[0].mxu0
  %v147 = vpop.f32.mrb[0].mxu0
  %v148 = vadd.f32 %v55, %v147
  %v149 = vpop.f32.mrb[0].mxu0
  %150 = vdwg.mxu0
  %vm151 = vcmp.gt.f32.partialorder %v145, 0.0
  %vm152 = vcmp.gt.f32.partialorder %v148, 0.0
  %v153 = vmul.f32 %v145, 0.01
  %v154 = vmul.f32 %v148, 0.01
  %v155 = vsel %vm151, %v145, %v153
  %v156 = vsel %vm152, %v148, %v154
  %v157 = vpack.c.bf16 %v156, %v155
  %v158 = vld [vmem:[%s2] sm:$0xf]
  %v159 = vld [vmem:[%s2 + $0x4] sm:$0xf]
  %v160 = vld [vmem:[%s2 + $0x8] sm:$0xf]
  %v161 = vld [vmem:[%s2 + $0xc] sm:$0xf]
  %v162 = vld [vmem:[%s2 + $0x10] sm:$0xf]
  %v163 = vld [vmem:[%s2 + $0x14] sm:$0xf]
  %v164 = vld [vmem:[%s2 + $0x18] sm:$0xf]
  %v165 = vld [vmem:[%s2 + $0x1c] sm:$0xf]
  %v166 = vlaneseq
  %v167 = vshrl.u32 %v166, 7
  %v168 = vsub.s32 1, %v167
  %v169 = vrot.slane %v35, %v168
  %v178 = vunpack.c.l.b16 %v158
  %v179 = vunpack.c.l.b16 %v159
  %v180 = vunpack.c.l.b16 %v160
  %v181 = vunpack.c.l.b16 %v161
  %v182 = vunpack.c.l.b16 %v162
  %v183 = vunpack.c.l.b16 %v163
  %v184 = vunpack.c.l.b16 %v164
  %v185 = vunpack.c.l.b16 %v165
  %v186 = vpack.c.b16 %v179, %v178
  %v187 = vpack.c.b16 %v181, %v180
  %v188 = vpack.c.b16 %v183, %v182
  %v189 = vpack.c.b16 %v185, %v184
  %vm194 = vcmask 523264
  %v196 = vsel %vm194, %v157, 0
  %198 = vmatprep.subr.bf16.mxu0 0
  %199 = vmatpush1.bf16.msra.mxu0 %v186
  %200 = vmatprep.subr.bf16.mxu0 0
  %201 = vmatpush1.bf16.msra.mxu0 %v187
  %202 = vmatprep.subr.bf16.mxu0 0
  %203 = vmatpush1.bf16.msra.mxu0 %v188
  %204 = vmatprep.subr.bf16.mxu0 0
  %205 = vmatpush1.bf16.msra.mxu0 %v189
  %206 = vmatprep.subr.bf16.mxu0 0
  %207 = vmatpush1.bf16.msra.mxu0 0
  %208 = vmatprep.subr.bf16.mxu0 0
  %209 = vmatpush1.bf16.msra.mxu0 0
  %210 = vmatprep.subr.bf16.mxu0 0
  %211 = vmatpush1.bf16.msra.mxu0 0
  %212 = vmatprep.subr.bf16.mxu0 0
  %213 = vmatpush1.bf16.msra.mxu0 0
  %214 = vmatprep.subr.bf16.mxu0 0
  %215 = vmatpush1.bf16.msra.mxu0 0
  %216 = vmatprep.subr.bf16.mxu0 0
  %217 = vmatpush1.bf16.msra.mxu0 0
  %218 = vmatprep.subr.bf16.mxu0 0
  %219 = vmatpush1.bf16.msra.mxu0 0
  %220 = vmatprep.subr.bf16.mxu0 0
  %221 = vmatpush1.bf16.msra.mxu0 0
  %222 = vmatprep.subr.bf16.mxu0 0
  %223 = vmatpush1.bf16.msra.mxu0 0
  %224 = vmatprep.subr.bf16.mxu0 0
  %225 = vmatpush1.bf16.msra.mxu0 0
  %226 = vmatprep.subr.bf16.mxu0 0
  %227 = vmatpush1.bf16.msra.mxu0 0
  %228 = vmatprep.subr.bf16.mxu0 0
  %229 = vmatpush1.bf16.msra.mxu0 0
  %230 = vmatprep.mubr.bf16.mxu0 0
  %231 = vmatmul.mubr.bf16.gmra.mrb[0].mxu0 %v196
  %v232 = vpop.f32.mrb[0].mxu0
  %v233 = vadd.f32 %v169, %v232
  %v234 = vpop.f32.mrb[0].mxu0
  %v235 = vpop.f32.mrb[0].mxu0
  %v236 = vadd.f32 %v169, %v235
  %v237 = vpop.f32.mrb[0].mxu0
  %238 = vdwg.mxu0
  %vm239 = vcmp.gt.f32.partialorder %v233, 0.0
  %vm240 = vcmp.gt.f32.partialorder %v236, 0.0
  %v241 = vmul.f32 %v233, 0.01
  %v242 = vmul.f32 %v236, 0.01
  %v243 = vsel %vm239, %v233, %v241
  %v244 = vsel %vm240, %v236, %v242
  %v245 = vpack.c.bf16 %v244, %v243
  %v246 = vld [vmem:[%s3] sm:$0xf]
  %v247 = vld [vmem:[%s3 + $0x4] sm:$0xf]
  %v248 = vld [vmem:[%s3 + $0x8] sm:$0xf]
  %v249 = vld [vmem:[%s3 + $0xc] sm:$0xf]
  %v250 = vld [vmem:[%s3 + $0x10] sm:$0xf]
  %v251 = vld [vmem:[%s3 + $0x14] sm:$0xf]
  %v252 = vld [vmem:[%s3 + $0x18] sm:$0xf]
  %v253 = vld [vmem:[%s3 + $0x1c] sm:$0xf]
  %v254 = vlaneseq
  %v255 = vshrl.u32 %v254, 7
  %v256 = vsub.s32 2, %v255
  %v257 = vrot.slane %v35, %v256
  %v266 = vunpack.c.l.b16 %v246
  %v267 = vunpack.c.l.b16 %v247
  %v268 = vunpack.c.l.b16 %v248
  %v269 = vunpack.c.l.b16 %v249
  %v270 = vunpack.c.l.b16 %v250
  %v271 = vunpack.c.l.b16 %v251
  %v272 = vunpack.c.l.b16 %v252
  %v273 = vunpack.c.l.b16 %v253
  %v274 = vpack.c.b16 %v267, %v266
  %v275 = vpack.c.b16 %v269, %v268
  %v276 = vpack.c.b16 %v271, %v270
  %v277 = vpack.c.b16 %v273, %v272
  %v283 = vsel %vm194, %v245, 0
  %285 = vmatprep.subr.bf16.mxu0 0
  %286 = vmatpush1.bf16.msra.mxu0 %v274
  %287 = vmatprep.subr.bf16.mxu0 0
  %288 = vmatpush1.bf16.msra.mxu0 %v275
  %289 = vmatprep.subr.bf16.mxu0 0
  %290 = vmatpush1.bf16.msra.mxu0 %v276
  %291 = vmatprep.subr.bf16.mxu0 0
  %292 = vmatpush1.bf16.msra.mxu0 %v277
  %293 = vmatprep.subr.bf16.mxu0 0
  %294 = vmatpush1.bf16.msra.mxu0 0
  %295 = vmatprep.subr.bf16.mxu0 0
  %296 = vmatpush1.bf16.msra.mxu0 0
  %297 = vmatprep.subr.bf16.mxu0 0
  %298 = vmatpush1.bf16.msra.mxu0 0
  %299 = vmatprep.subr.bf16.mxu0 0
  %300 = vmatpush1.bf16.msra.mxu0 0
  %301 = vmatprep.subr.bf16.mxu0 0
  %302 = vmatpush1.bf16.msra.mxu0 0
  %303 = vmatprep.subr.bf16.mxu0 0
  %304 = vmatpush1.bf16.msra.mxu0 0
  %305 = vmatprep.subr.bf16.mxu0 0
  %306 = vmatpush1.bf16.msra.mxu0 0
  %307 = vmatprep.subr.bf16.mxu0 0
  %308 = vmatpush1.bf16.msra.mxu0 0
  %309 = vmatprep.subr.bf16.mxu0 0
  %310 = vmatpush1.bf16.msra.mxu0 0
  %311 = vmatprep.subr.bf16.mxu0 0
  %312 = vmatpush1.bf16.msra.mxu0 0
  %313 = vmatprep.subr.bf16.mxu0 0
  %314 = vmatpush1.bf16.msra.mxu0 0
  %315 = vmatprep.subr.bf16.mxu0 0
  %316 = vmatpush1.bf16.msra.mxu0 0
  %317 = vmatprep.mubr.bf16.mxu0 0
  %318 = vmatmul.mubr.bf16.gmra.mrb[0].mxu0 %v283
  %v319 = vpop.f32.mrb[0].mxu0
  %v320 = vadd.f32 %v257, %v319
  %v321 = vpop.f32.mrb[0].mxu0
  %v322 = vpop.f32.mrb[0].mxu0
  %v323 = vadd.f32 %v257, %v322
  %v324 = vpop.f32.mrb[0].mxu0
  %325 = vdwg.mxu0
  %v326 = vpack.c.bf16 %v323, %v320
  %v327 = vld [vmem:[%s4] sm:$0xf]
  %v328 = vld [vmem:[%s4 + $0x4] sm:$0xf]
  %v329 = vld [vmem:[%s4 + $0x8] sm:$0xf]
  %v330 = vld [vmem:[%s4 + $0xc] sm:$0xf]
  %v331 = vld [vmem:[%s4 + $0x10] sm:$0xf]
  %v332 = vld [vmem:[%s4 + $0x14] sm:$0xf]
  %v333 = vld [vmem:[%s4 + $0x18] sm:$0xf]
  %v334 = vld [vmem:[%s4 + $0x1c] sm:$0xf]
  %v335 = vld [vmem:[%s5] sm:$0xf]
  %v336 = vld [vmem:[%s5 + $0x4] sm:$0xf]
  %v337 = vld [vmem:[%s5 + $0x8] sm:$0xf]
  %v338 = vld [vmem:[%s5 + $0xc] sm:$0xf]
  %v339 = vld [vmem:[%s5 + $0x10] sm:$0xf]
  %v340 = vld [vmem:[%s5 + $0x14] sm:$0xf]
  %v341 = vld [vmem:[%s5 + $0x18] sm:$0xf]
  %v342 = vld [vmem:[%s5 + $0x1c] sm:$0xf]
  %v343 = vld [vmem:[%s5 + $0x20] sm:$0xf]
  %v344 = vld [vmem:[%s5 + $0x24] sm:$0xf]
  %v345 = vld [vmem:[%s5 + $0x28] sm:$0xf]
  %v346 = vld [vmem:[%s5 + $0x2c] sm:$0xf]
  %v347 = vld [vmem:[%s5 + $0x30] sm:$0xf]
  %v348 = vld [vmem:[%s5 + $0x34] sm:$0xf]
  %v349 = vld [vmem:[%s5 + $0x38] sm:$0xf]
  %v350 = vld [vmem:[%s5 + $0x3c] sm:$0xf]
  %v367 = vunpack.c.l.b16 %v335
  %v368 = vunpack.c.l.b16 %v336
  %v369 = vunpack.c.l.b16 %v337
  %v370 = vunpack.c.l.b16 %v338
  %v371 = vunpack.c.l.b16 %v339
  %v372 = vunpack.c.l.b16 %v340
  %v373 = vunpack.c.l.b16 %v341
  %v374 = vunpack.c.l.b16 %v342
  %v375 = vunpack.c.l.b16 %v343
  %v376 = vunpack.c.l.b16 %v344
  %v377 = vunpack.c.l.b16 %v345
  %v378 = vunpack.c.l.b16 %v346
  %v379 = vunpack.c.l.b16 %v347
  %v380 = vunpack.c.l.b16 %v348
  %v381 = vunpack.c.l.b16 %v349
  %v382 = vunpack.c.l.b16 %v350
  %v383 = vpack.c.b16 %v368, %v367
  %v384 = vpack.c.b16 %v370, %v369
  %v385 = vpack.c.b16 %v372, %v371
  %v386 = vpack.c.b16 %v374, %v373
  %v387 = vpack.c.b16 %v376, %v375
  %v388 = vpack.c.b16 %v378, %v377
  %v389 = vpack.c.b16 %v380, %v379
  %v390 = vpack.c.b16 %v382, %v381
  %399 = vmatprep.subr.bf16.mxu0 0
  %400 = vmatpush1.bf16.msra.mxu0 %v383
  %401 = vmatprep.subr.bf16.mxu0 0
  %402 = vmatpush1.bf16.msra.mxu0 %v384
  %403 = vmatprep.subr.bf16.mxu0 0
  %404 = vmatpush1.bf16.msra.mxu0 %v385
  %405 = vmatprep.subr.bf16.mxu0 0
  %406 = vmatpush1.bf16.msra.mxu0 %v386
  %407 = vmatprep.subr.bf16.mxu0 0
  %408 = vmatpush1.bf16.msra.mxu0 %v387
  %409 = vmatprep.subr.bf16.mxu0 0
  %410 = vmatpush1.bf16.msra.mxu0 %v388
  %411 = vmatprep.subr.bf16.mxu0 0
  %412 = vmatpush1.bf16.msra.mxu0 %v389
  %413 = vmatprep.subr.bf16.mxu0 0
  %414 = vmatpush1.bf16.msra.mxu0 %v390
  %415 = vmatprep.subr.bf16.mxu0 0
  %416 = vmatpush1.bf16.msra.mxu0 0
  %417 = vmatprep.subr.bf16.mxu0 0
  %418 = vmatpush1.bf16.msra.mxu0 0
  %419 = vmatprep.subr.bf16.mxu0 0
  %420 = vmatpush1.bf16.msra.mxu0 0
  %421 = vmatprep.subr.bf16.mxu0 0
  %422 = vmatpush1.bf16.msra.mxu0 0
  %423 = vmatprep.subr.bf16.mxu0 0
  %424 = vmatpush1.bf16.msra.mxu0 0
  %425 = vmatprep.subr.bf16.mxu0 0
  %426 = vmatpush1.bf16.msra.mxu0 0
  %427 = vmatprep.subr.bf16.mxu0 0
  %428 = vmatpush1.bf16.msra.mxu0 0
  %429 = vmatprep.subr.bf16.mxu0 0
  %430 = vmatpush1.bf16.msra.mxu0 0
  %431 = vmatprep.mubr.bf16.mxu0 0
  %432 = vmatmul.mubr.bf16.gmra.mrb[0].mxu0 %v60
  %v433 = vpop.f32.mrb[0].mxu0
  %v434 = vadd.f32 0.0, %v433
  %v435 = vpop.f32.mrb[0].mxu0
  %v436 = vpop.f32.mrb[0].mxu0
  %v437 = vadd.f32 0.0, %v436
  %v438 = vpop.f32.mrb[0].mxu0
  %439 = vdwg.mxu0
  %v448 = vunpack.c.l.b16 %v327
  %v449 = vunpack.c.l.b16 %v328
  %v450 = vunpack.c.l.b16 %v329
  %v451 = vunpack.c.l.b16 %v330
  %v452 = vunpack.c.l.b16 %v331
  %v453 = vunpack.c.l.b16 %v332
  %v454 = vunpack.c.l.b16 %v333
  %v455 = vunpack.c.l.b16 %v334
  %v456 = vpack.c.b16 %v449, %v448
  %v457 = vpack.c.b16 %v451, %v450
  %v458 = vpack.c.b16 %v453, %v452
  %v459 = vpack.c.b16 %v455, %v454
  %v465 = vsel %vm194, %v326, 0
  %467 = vmatprep.subr.bf16.mxu0 0
  %468 = vmatpush1.bf16.msra.mxu0 %v456
  %469 = vmatprep.subr.bf16.mxu0 0
  %470 = vmatpush1.bf16.msra.mxu0 %v457
  %471 = vmatprep.subr.bf16.mxu0 0
  %472 = vmatpush1.bf16.msra.mxu0 %v458
  %473 = vmatprep.subr.bf16.mxu0 0
  %474 = vmatpush1.bf16.msra.mxu0 %v459
  %475 = vmatprep.subr.bf16.mxu0 0
  %476 = vmatpush1.bf16.msra.mxu0 0
  %477 = vmatprep.subr.bf16.mxu0 0
  %478 = vmatpush1.bf16.msra.mxu0 0
  %479 = vmatprep.subr.bf16.mxu0 0
  %480 = vmatpush1.bf16.msra.mxu0 0
  %481 = vmatprep.subr.bf16.mxu0 0
  %482 = vmatpush1.bf16.msra.mxu0 0
  %483 = vmatprep.subr.bf16.mxu0 0
  %484 = vmatpush1.bf16.msra.mxu0 0
  %485 = vmatprep.subr.bf16.mxu0 0
  %486 = vmatpush1.bf16.msra.mxu0 0
  %487 = vmatprep.subr.bf16.mxu0 0
  %488 = vmatpush1.bf16.msra.mxu0 0
  %489 = vmatprep.subr.bf16.mxu0 0
  %490 = vmatpush1.bf16.msra.mxu0 0
  %491 = vmatprep.subr.bf16.mxu0 0
  %492 = vmatpush1.bf16.msra.mxu0 0
  %493 = vmatprep.subr.bf16.mxu0 0
  %494 = vmatpush1.bf16.msra.mxu0 0
  %495 = vmatprep.subr.bf16.mxu0 0
  %496 = vmatpush1.bf16.msra.mxu0 0
  %497 = vmatprep.subr.bf16.mxu0 0
  %498 = vmatpush1.bf16.msra.mxu0 0
  %499 = vmatprep.mubr.bf16.mxu0 0
  %500 = vmatmul.mubr.bf16.gmra.mrb[0].mxu0 %v465
  %v501 = vpop.f32.mrb[0].mxu0
  %v502 = vadd.f32 %v434, %v501
  %v503 = vpop.f32.mrb[0].mxu0
  %v504 = vpop.f32.mrb[0].mxu0
  %v505 = vadd.f32 %v437, %v504
  %v506 = vpop.f32.mrb[0].mxu0
  %507 = vdwg.mxu0
  %v508 = vlaneseq
  %v509 = vshrl.u32 %v508, 7
  %v510 = vsub.s32 3, %v509
  %v511 = vrot.slane %v35, %v510
  %v512 = vadd.f32 %v502, %v511
  %v513 = vadd.f32 %v505, %v511
  %vm514 = vcmp.gt.f32.partialorder %v512, 0.0
  %vm515 = vcmp.gt.f32.partialorder %v513, 0.0
  %v516 = vmul.f32 %v512, 0.01
  %v517 = vmul.f32 %v513, 0.01
  %v518 = vsel %vm514, %v512, %v516
  %v519 = vsel %vm515, %v513, %v517
  %v520 = vpack.c.bf16 %v519, %v518
  %v521 = vld [vmem:[%s6] sm:$0xf]
  %v522 = vld [vmem:[%s6 + $0x4] sm:$0xf]
  %v523 = vld [vmem:[%s6 + $0x8] sm:$0xf]
  %v524 = vld [vmem:[%s6 + $0xc] sm:$0xf]
  %v525 = vld [vmem:[%s6 + $0x10] sm:$0xf]
  %v526 = vld [vmem:[%s6 + $0x14] sm:$0xf]
  %v527 = vld [vmem:[%s6 + $0x18] sm:$0xf]
  %v528 = vld [vmem:[%s6 + $0x1c] sm:$0xf]
  %v529 = vld [vmem:[%s7] sm:$0xf]
  %v530 = vld [vmem:[%s7 + $0x4] sm:$0xf]
  %v531 = vld [vmem:[%s7 + $0x8] sm:$0xf]
  %v532 = vld [vmem:[%s7 + $0xc] sm:$0xf]
  %v533 = vld [vmem:[%s7 + $0x10] sm:$0xf]
  %v534 = vld [vmem:[%s7 + $0x14] sm:$0xf]
  %v535 = vld [vmem:[%s7 + $0x18] sm:$0xf]
  %v536 = vld [vmem:[%s7 + $0x1c] sm:$0xf]
  %v537 = vld [vmem:[%s7 + $0x20] sm:$0xf]
  %v538 = vld [vmem:[%s7 + $0x24] sm:$0xf]
  %v539 = vld [vmem:[%s7 + $0x28] sm:$0xf]
  %v540 = vld [vmem:[%s7 + $0x2c] sm:$0xf]
  %v541 = vld [vmem:[%s7 + $0x30] sm:$0xf]
  %v542 = vld [vmem:[%s7 + $0x34] sm:$0xf]
  %v543 = vld [vmem:[%s7 + $0x38] sm:$0xf]
  %v544 = vld [vmem:[%s7 + $0x3c] sm:$0xf]
  %v561 = vunpack.c.l.b16 %v529
  %v562 = vunpack.c.l.b16 %v530
  %v563 = vunpack.c.l.b16 %v531
  %v564 = vunpack.c.l.b16 %v532
  %v565 = vunpack.c.l.b16 %v533
  %v566 = vunpack.c.l.b16 %v534
  %v567 = vunpack.c.l.b16 %v535
  %v568 = vunpack.c.l.b16 %v536
  %v569 = vunpack.c.l.b16 %v537
  %v570 = vunpack.c.l.b16 %v538
  %v571 = vunpack.c.l.b16 %v539
  %v572 = vunpack.c.l.b16 %v540
  %v573 = vunpack.c.l.b16 %v541
  %v574 = vunpack.c.l.b16 %v542
  %v575 = vunpack.c.l.b16 %v543
  %v576 = vunpack.c.l.b16 %v544
  %v577 = vpack.c.b16 %v562, %v561
  %v578 = vpack.c.b16 %v564, %v563
  %v579 = vpack.c.b16 %v566, %v565
  %v580 = vpack.c.b16 %v568, %v567
  %v581 = vpack.c.b16 %v570, %v569
  %v582 = vpack.c.b16 %v572, %v571
  %v583 = vpack.c.b16 %v574, %v573
  %v584 = vpack.c.b16 %v576, %v575
  %593 = vmatprep.subr.bf16.mxu0 0
  %594 = vmatpush1.bf16.msra.mxu0 %v577
  %595 = vmatprep.subr.bf16.mxu0 0
  %596 = vmatpush1.bf16.msra.mxu0 %v578
  %597 = vmatprep.subr.bf16.mxu0 0
  %598 = vmatpush1.bf16.msra.mxu0 %v579
  %599 = vmatprep.subr.bf16.mxu0 0
  %600 = vmatpush1.bf16.msra.mxu0 %v580
  %601 = vmatprep.subr.bf16.mxu0 0
  %602 = vmatpush1.bf16.msra.mxu0 %v581
  %603 = vmatprep.subr.bf16.mxu0 0
  %604 = vmatpush1.bf16.msra.mxu0 %v582
  %605 = vmatprep.subr.bf16.mxu0 0
  %606 = vmatpush1.bf16.msra.mxu0 %v583
  %607 = vmatprep.subr.bf16.mxu0 0
  %608 = vmatpush1.bf16.msra.mxu0 %v584
  %609 = vmatprep.subr.bf16.mxu0 0
  %610 = vmatpush1.bf16.msra.mxu0 0
  %611 = vmatprep.subr.bf16.mxu0 0
  %612 = vmatpush1.bf16.msra.mxu0 0
  %613 = vmatprep.subr.bf16.mxu0 0
  %614 = vmatpush1.bf16.msra.mxu0 0
  %615 = vmatprep.subr.bf16.mxu0 0
  %616 = vmatpush1.bf16.msra.mxu0 0
  %617 = vmatprep.subr.bf16.mxu0 0
  %618 = vmatpush1.bf16.msra.mxu0 0
  %619 = vmatprep.subr.bf16.mxu0 0
  %620 = vmatpush1.bf16.msra.mxu0 0
  %621 = vmatprep.subr.bf16.mxu0 0
  %622 = vmatpush1.bf16.msra.mxu0 0
  %623 = vmatprep.subr.bf16.mxu0 0
  %624 = vmatpush1.bf16.msra.mxu0 0
  %625 = vmatprep.mubr.bf16.mxu0 0
  %626 = vmatmul.mubr.bf16.gmra.mrb[0].mxu0 %v60
  %v627 = vpop.f32.mrb[0].mxu0
  %v628 = vadd.f32 0.0, %v627
  %v629 = vpop.f32.mrb[0].mxu0
  %v630 = vpop.f32.mrb[0].mxu0
  %v631 = vadd.f32 0.0, %v630
  %v632 = vpop.f32.mrb[0].mxu0
  %633 = vdwg.mxu0
  %v642 = vunpack.c.l.b16 %v521
  %v643 = vunpack.c.l.b16 %v522
  %v644 = vunpack.c.l.b16 %v523
  %v645 = vunpack.c.l.b16 %v524
  %v646 = vunpack.c.l.b16 %v525
  %v647 = vunpack.c.l.b16 %v526
  %v648 = vunpack.c.l.b16 %v527
  %v649 = vunpack.c.l.b16 %v528
  %v650 = vpack.c.b16 %v643, %v642
  %v651 = vpack.c.b16 %v645, %v644
  %v652 = vpack.c.b16 %v647, %v646
  %v653 = vpack.c.b16 %v649, %v648
  %v659 = vsel %vm194, %v520, 0
  %661 = vmatprep.subr.bf16.mxu0 0
  %662 = vmatpush1.bf16.msra.mxu0 %v650
  %663 = vmatprep.subr.bf16.mxu0 0
  %664 = vmatpush1.bf16.msra.mxu0 %v651
  %665 = vmatprep.subr.bf16.mxu0 0
  %666 = vmatpush1.bf16.msra.mxu0 %v652
  %667 = vmatprep.subr.bf16.mxu0 0
  %668 = vmatpush1.bf16.msra.mxu0 %v653
  %669 = vmatprep.subr.bf16.mxu0 0
  %670 = vmatpush1.bf16.msra.mxu0 0
  %671 = vmatprep.subr.bf16.mxu0 0
  %672 = vmatpush1.bf16.msra.mxu0 0
  %673 = vmatprep.subr.bf16.mxu0 0
  %674 = vmatpush1.bf16.msra.mxu0 0
  %675 = vmatprep.subr.bf16.mxu0 0
  %676 = vmatpush1.bf16.msra.mxu0 0
  %677 = vmatprep.subr.bf16.mxu0 0
  %678 = vmatpush1.bf16.msra.mxu0 0
  %679 = vmatprep.subr.bf16.mxu0 0
  %680 = vmatpush1.bf16.msra.mxu0 0
  %681 = vmatprep.subr.bf16.mxu0 0
  %682 = vmatpush1.bf16.msra.mxu0 0
  %683 = vmatprep.subr.bf16.mxu0 0
  %684 = vmatpush1.bf16.msra.mxu0 0
  %685 = vmatprep.subr.bf16.mxu0 0
  %686 = vmatpush1.bf16.msra.mxu0 0
  %687 = vmatprep.subr.bf16.mxu0 0
  %688 = vmatpush1.bf16.msra.mxu0 0
  %689 = vmatprep.subr.bf16.mxu0 0
  %690 = vmatpush1.bf16.msra.mxu0 0
  %691 = vmatprep.subr.bf16.mxu0 0
  %692 = vmatpush1.bf16.msra.mxu0 0
  %693 = vmatprep.mubr.bf16.mxu0 0
  %694 = vmatmul.mubr.bf16.gmra.mrb[0].mxu0 %v659
  %v695 = vpop.f32.mrb[0].mxu0
  %v696 = vadd.f32 %v628, %v695
  %v697 = vpop.f32.mrb[0].mxu0
  %v698 = vpop.f32.mrb[0].mxu0
  %v699 = vadd.f32 %v631, %v698
  %v700 = vpop.f32.mrb[0].mxu0
  %701 = vdwg.mxu0
  %v702 = vlaneseq
  %v703 = vshrl.u32 %v702, 7
  %v704 = vsub.s32 4, %v703
  %v705 = vrot.slane %v35, %v704
  %v706 = vadd.f32 %v696, %v705
  %v707 = vadd.f32 %v699, %v705
  %v709 = vunpack.c.l.b16 %v326
  %v710 = vunpack.c.h.b16 %v326
  %v711 = vpack.c.b16 %v709, %v709
  %v712 = vpack.c.b16 %v710, %v710
  %713 = vrot.lane.b32.xlu0 %v711, 96
  %v714 = vpop.permute.xlu0 %713
  %715 = vrot.lane.b32.xlu0 %v712, 96
  %v716 = vpop.permute.xlu0 %715
  %vm719 = vcmask 257024
  %720 = vst.msk [vmem:[%s9] sm:$0xf] %vm719, %v714
  %721 = vst.msk [vmem:[%s9 + $0x4] sm:$0xf] %vm719, %v716
  %v722 = vpack.c.bf16 %v707, %v706
  %v724 = vunpack.c.l.b16 %v722
  %v725 = vunpack.c.h.b16 %v722
  %v726 = vpack.c.b16 %v724, %v724
  %v727 = vpack.c.b16 %v725, %v725
  %728 = vrot.lane.b32.xlu0 %v726, 32
  %v729 = vpop.permute.xlu0 %728
  %730 = vrot.lane.b32.xlu0 %v727, 32
  %v731 = vpop.permute.xlu0 %730
  %vm734 = vcmask 584960
  %735 = vst.msk [vmem:[%s9] sm:$0xf] %vm734, %v729
  %736 = vst.msk [vmem:[%s9 + $0x4] sm:$0xf] %vm734, %v731
  // Predicated region
  $region38: #{_lambda_.1} parent=0 // pred_check
    _
  $region39: #{_lambda_.1} parent=0 // pred_check_branch
    %738 = sbr.rel (0) target = $region41
  $region40: #{_lambda_.1} parent=0 // pred_region
    _
  $region41: #{_lambda_.1} parent=0 // pred_fallthru
    _
  // Predicated region
  $region42: #{_lambda_.1} parent=0 // pred_check
    _
  $region43: #{_lambda_.1} parent=0 // pred_check_branch
    %740 = sbr.rel (0) target = $region45
  $region44: #{_lambda_.1} parent=0 // pred_region
    _
  $region45: #{_lambda_.1} parent=0 // pred_fallthru
    _

</llo_original>
